<compile_context>
chip_gen: v7x
topology: tpu7x:2x2x1
jax: 0.10.0
libtpu: 0.0.40
codegen_flags: <defaults>
</compile_context>

<pallas_src>
import functools

import jax
import jax.numpy as jnp
from jax.experimental import pallas as pl
from jax.experimental.pallas import tpu as pltpu

EPSILON = 0.1  # module default


def _ls_ce_kernel(preds_ref, target_ref, out_ref, *, epsilon, num_classes,
                  true_n, tile_n):
    """One batch tile: emit a lane-dense block holding this tile's partial sum."""
    i = pl.program_id(0)

    x = preds_ref[...].astype(jnp.float32)               # (T, C)
    t = target_ref[...]                                   # (T, 1) int32

    # Numerically stable log-softmax pieces; never materialize logp or one-hot.
    m = jnp.max(x, axis=-1, keepdims=True)                # (T, 1)
    z = x - m                                             # (T, C)
    lse = jnp.log(jnp.sum(jnp.exp(z), axis=-1, keepdims=True))   # (T, 1)
    sum_z = jnp.sum(z, axis=-1, keepdims=True)            # (T, 1)

    col = jax.lax.broadcasted_iota(jnp.int32, z.shape, 1)
    z_t = jnp.sum(jnp.where(col == t, z, 0.0), axis=-1, keepdims=True)  # (T, 1)

    smooth_row = num_classes * lse - sum_z                 # == -sum(logp, -1)
    nll_row = lse - z_t                                    # == -logp[target]
    per_row = (epsilon / num_classes) * smooth_row + (1.0 - epsilon) * nll_row

    # Mask the zero-padded rows of the last tile (true_n is static).
    row = jax.lax.broadcasted_iota(jnp.int32, per_row.shape, 0) + i * tile_n
    per_row = jnp.where(row < true_n, per_row, 0.0)

    # Lane-dense, unmasked full-block store of this tile's partial sum.
    out_ref[...] = jnp.full(out_ref.shape, jnp.sum(per_row), dtype=jnp.float32)


def _choose_tile_n(n, c, itemsize, sublane):
    """Rows per tile: ~6 MiB/block so 2x double buffering fits all generations."""
    target_block_bytes = 6 * 1024 * 1024
    rows = max(sublane, target_block_bytes // max(1, c * itemsize))
    rows = max(sublane, (rows // sublane) * sublane)
    rows = min(rows, 2048)
    n_rounded = ((n + sublane - 1) // sublane) * sublane
    return int(min(rows, n_rounded))


def label_smoothing_cross_entropy(preds, target, epsilon: float = EPSILON):
    """preds: [N, C] float, target: [N] int -> scalar float32 (reduction='mean')."""
    n, c = preds.shape
    itemsize = jnp.dtype(preds.dtype).itemsize
    sublane = 16 if itemsize == 2 else 8              # bf16 packs 16 rows / vreg
    tile_n = _choose_tile_n(n, c, itemsize, sublane)
    num_tiles = (n + tile_n - 1) // tile_n
    n_pad = num_tiles * tile_n

    if n_pad != n:                                    # zero-pad; rows masked in-kernel
        preds = jnp.pad(preds, ((0, n_pad - n), (0, 0)))
        target = jnp.pad(target, ((0, n_pad - n),))
    target2d = target.astype(jnp.int32).reshape(n_pad, 1)

    kernel = functools.partial(
        _ls_ce_kernel, epsilon=float(epsilon), num_classes=c,
        true_n=n, tile_n=tile_n)

    block_bytes = tile_n * c * itemsize
    vmem_limit = int(min(96 << 20, max(32 << 20, 3 * block_bytes + (4 << 20))))

    # TODO(synk): for vocab-scale C (>= ~16K classes) also tile the class axis
    # with an online logsumexp (flash-style) so each block stays small/aligned.
    partials = pl.pallas_call(
        kernel,
        out_shape=jax.ShapeDtypeStruct((num_tiles, 8, 128), jnp.float32),
        grid_spec=pltpu.PrefetchScalarGridSpec(
            num_scalar_prefetch=0,
            grid=(num_tiles,),
            in_specs=[
                pl.BlockSpec((tile_n, c), lambda i: (i, 0)),
                pl.BlockSpec((tile_n, 1), lambda i: (i, 0)),
            ],
            out_specs=pl.BlockSpec((1, 8, 128), lambda i: (i, 0, 0)),
        ),
        compiler_params=pltpu.CompilerParams(
            dimension_semantics=("parallel",),
            vmem_limit_bytes=vmem_limit,
        ),
        cost_estimate=pl.CostEstimate(
            flops=8 * n * c,
            transcendentals=n * c,
            bytes_accessed=n * c * itemsize + n * 4 + num_tiles * 8 * 128 * 4,
        ),
    )(preds, target2d)

    # Tiny epilogue: sum per-tile f32 partials, divide by the true batch size.
    return jnp.sum(partials[:, 0, 0]) / n


def _reference(preds, target, epsilon: float = EPSILON):
    logp = jax.nn.log_softmax(preds.astype(jnp.float32), axis=-1)
    c = preds.shape[-1]
    loss = jnp.mean(-jnp.sum(logp, axis=-1))
    nll = jnp.mean(
        -jnp.take_along_axis(logp, target[:, None].astype(jnp.int32), axis=-1)[:, 0])
    return epsilon * (loss / c) + (1.0 - epsilon) * nll


if __name__ == "__main__":
    key = jax.random.PRNGKey(0)
    k1, k2, k3, k4 = jax.random.split(key, 4)

    # Case 1: batch is a clean multiple of the row tile.
    preds1 = jax.random.normal(k1, (8, 32), dtype=jnp.float32)
    target1 = jax.random.randint(k2, (8,), 0, 32, dtype=jnp.int32)
    out1 = jax.block_until_ready(label_smoothing_cross_entropy(preds1, target1))
    ref1 = _reference(preds1, target1)
    assert jnp.allclose(out1, ref1, atol=1e-5, rtol=1e-5), (out1, ref1)

    # Case 2: batch NOT a multiple of the tile -> exercises padding + masking.
    preds2 = jax.random.normal(k3, (10, 32), dtype=jnp.float32)
    target2 = jax.random.randint(k4, (10,), 0, 32, dtype=jnp.int32)
    out2 = jax.block_until_ready(label_smoothing_cross_entropy(preds2, target2))
    ref2 = _reference(preds2, target2)
    assert jnp.allclose(out2, ref2, atol=1e-5, rtol=1e-5), (out2, ref2)

    print("KERNEL_OK")
</pallas_src>

<mosaic_0001>
module attributes {stable_mosaic.version = 11 : i64} {
  func.func @_ls_ce_kernel(%arg0: i32, %arg1: memref<8x32xf32, #tpu.memory_space<vmem>>, %arg2: memref<8x1xi32, #tpu.memory_space<vmem>>, %arg3: memref<1x8x128xf32, #tpu.memory_space<vmem>>) attributes {dimension_semantics = [#tpu.dimension_semantics<parallel>], iteration_bounds = array<i64: 1>, scalar_prefetch = 0 : i64, scratch_operands = 0 : i64, tpu.core_type = #tpu.core_type<tc>, window_params = [{transform_indices = @transform_0, window_bounds = array<i64: 8, 32>}, {transform_indices = @transform_1, window_bounds = array<i64: 8, 1>}, {transform_indices = @transform_2, window_bounds = array<i64: 1, 8, 128>}]} {
    %c0 = arith.constant 0 : index
    %c0_0 = arith.constant 0 : index
    %0 = vector.load %arg1[%c0, %c0_0] : memref<8x32xf32, #tpu.memory_space<vmem>>, vector<8x32xf32>
    %c0_1 = arith.constant 0 : index
    %c0_2 = arith.constant 0 : index
    %1 = vector.load %arg2[%c0_1, %c0_2] : memref<8x1xi32, #tpu.memory_space<vmem>>, vector<8x1xi32>
    %cst = arith.constant dense<0xFF800000> : vector<8xf32>
    %2 = vector.multi_reduction <maximumf>, %0, %cst [1] : vector<8x32xf32> to vector<8xf32>
    %3 = vector.shape_cast %2 : vector<8xf32> to vector<8x1xf32>
    %4 = vector.broadcast %3 : vector<8x1xf32> to vector<8x32xf32>
    %5 = arith.subf %0, %4 : vector<8x32xf32>
    %6 = math.exp %5 : vector<8x32xf32>
    %cst_3 = arith.constant dense<0.000000e+00> : vector<8xf32>
    %7 = vector.multi_reduction <add>, %6, %cst_3 [1] : vector<8x32xf32> to vector<8xf32>
    %8 = vector.shape_cast %7 : vector<8xf32> to vector<8x1xf32>
    %9 = math.log %8 : vector<8x1xf32>
    %cst_4 = arith.constant dense<0.000000e+00> : vector<8xf32>
    %10 = vector.multi_reduction <add>, %5, %cst_4 [1] : vector<8x32xf32> to vector<8xf32>
    %11 = vector.shape_cast %10 : vector<8xf32> to vector<8x1xf32>
    %12 = tpu.iota {dimensions = array<i32: 1>} : vector<8x32xi32>
    %13 = vector.broadcast %1 : vector<8x1xi32> to vector<8x32xi32>
    %14 = arith.cmpi eq, %12, %13 : vector<8x32xi32>
    %cst_5 = arith.constant 0.000000e+00 : f32
    %15 = vector.broadcast %cst_5 : f32 to vector<8x32xf32>
    %16 = arith.select %14, %5, %15 : vector<8x32xi1>, vector<8x32xf32>
    %cst_6 = arith.constant dense<0.000000e+00> : vector<8xf32>
    %17 = vector.multi_reduction <add>, %16, %cst_6 [1] : vector<8x32xf32> to vector<8xf32>
    %18 = vector.shape_cast %17 : vector<8xf32> to vector<8x1xf32>
    %cst_7 = arith.constant 3.200000e+01 : f32
    %19 = vector.broadcast %cst_7 : f32 to vector<8x1xf32>
    %20 = arith.mulf %19, %9 : vector<8x1xf32>
    %21 = arith.subf %20, %11 : vector<8x1xf32>
    %22 = arith.subf %9, %18 : vector<8x1xf32>
    %cst_8 = arith.constant 3.125000e-03 : f32
    %23 = vector.broadcast %cst_8 : f32 to vector<8x1xf32>
    %24 = arith.mulf %23, %21 : vector<8x1xf32>
    %cst_9 = arith.constant 0.899999976 : f32
    %25 = vector.broadcast %cst_9 : f32 to vector<8x1xf32>
    %26 = arith.mulf %25, %22 : vector<8x1xf32>
    %27 = arith.addf %24, %26 : vector<8x1xf32>
    %28 = tpu.iota {dimensions = array<i32: 0>} : vector<8x1xi32>
    %c8_i32 = arith.constant 8 : i32
    %29 = arith.muli %arg0, %c8_i32 : i32
    %30 = vector.broadcast %29 : i32 to vector<8x1xi32>
    %31 = arith.addi %28, %30 : vector<8x1xi32>
    %c8_i32_10 = arith.constant 8 : i32
    %32 = vector.broadcast %c8_i32_10 : i32 to vector<8x1xi32>
    %33 = arith.cmpi slt, %31, %32 : vector<8x1xi32>
    %cst_11 = arith.constant 0.000000e+00 : f32
    %34 = vector.broadcast %cst_11 : f32 to vector<8x1xf32>
    %35 = arith.select %33, %27, %34 : vector<8x1xi1>, vector<8x1xf32>
    %36 = vector.shape_cast %35 : vector<8x1xf32> to vector<1x8x1xf32>
    %cst_12 = arith.constant dense<0.000000e+00> : vector<1xf32>
    %37 = vector.multi_reduction <add>, %36, %cst_12 [1, 2] : vector<1x8x1xf32> to vector<1xf32>
    %38 = vector.shape_cast %37 : vector<1xf32> to vector<1x1x1xf32>
    %39 = vector.extract %38[0, 0, 0] : f32 from vector<1x1x1xf32>
    %40 = vector.broadcast %39 : f32 to vector<1x8x128xf32>
    %c0_13 = arith.constant 0 : index
    %c0_14 = arith.constant 0 : index
    %c0_15 = arith.constant 0 : index
    %41 = vector.load %arg3[%c0_13, %c0_14, %c0_15] : memref<1x8x128xf32, #tpu.memory_space<vmem>>, vector<1x8x128xf32>
    tpu.vector_store %arg3[%c0_13, %c0_14, %c0_15], %40 {strides = array<i32>} : memref<1x8x128xf32, #tpu.memory_space<vmem>>, vector<1x8x128xf32>,
    return
  }
  func.func @transform_0(%arg0: i32) -> (i32, i32) {
    %c0_i32 = arith.constant 0 : i32
    %c0_i32_0 = arith.constant 0 : i32
    return %arg0, %c0_i32 : i32, i32
  }
  func.func @transform_1(%arg0: i32) -> (i32, i32) {
    %c0_i32 = arith.constant 0 : i32
    %c0_i32_0 = arith.constant 0 : i32
    return %arg0, %c0_i32 : i32, i32
  }
  func.func @transform_2(%arg0: i32) -> (i32, i32, i32) {
    %c0_i32 = arith.constant 0 : i32
    %c0_i32_0 = arith.constant 0 : i32
    %c0_i32_1 = arith.constant 0 : i32
    return %arg0, %c0_i32, %c0_i32_0 : i32, i32, i32
  }
}

</mosaic_0001>

<llo_original>
// kernel: tpu_custom_call.1
$region0: #{tpu_custom_call.1}
  #allocation0 [shape = 'u32[]', space=smem, size = 0x4, offset = 0x4, fixed_abs, tag = 'smem constant byte address 0x4 - core index']
  #allocation1 [shape = 'u32[144,128]{1,0:T(1,128)}', space=vmem, size = 0x12000, scoped, tag = 'internal scratch']
  %s0 = inlined_call_operand.vmem [shape: f32[8,32], index: 0, kind: input, shape index: {}]
  %s1 = inlined_call_operand.vmem [shape: s32[8,1], index: 1, kind: input, shape index: {}]
  %s2 = inlined_call_operand.hbm [shape: f32[1,8,128], index: 2, kind: output, shape index: {}]
  %s3 = sld [smem:[#allocation0]]
  $region18: #{tpu_custom_call.1} parent=0
    _
  %s5 = ssub.s32 1, %s3
  %s6 = scalar_select 0, %s5, %s3
  $region1: #{tpu_custom_call.1} parent=0
    #allocation2 [shape = 'u8[4096]{0}', space=vmem, size = 0x1000, scoped, tag = 'output window, operand 0, single buffered']
    #allocation3 [shape = 's32[1]{0}', space=sflag, size = 0x4, scoped, tag = 'scoped memory for tpu_custom_call.1']
    %7 = vsyncpa [#allocation3], 0
    // Predicated region
    $region2: #{tpu_custom_call.1} parent=1 // pred_check
      _
    $region3: #{tpu_custom_call.1} parent=1 // pred_check_branch
      %9 = sbr.rel (0) target = $region5
    $region4: #{tpu_custom_call.1} parent=1 // pred_region
      _
    $region5: #{tpu_custom_call.1} parent=1 // pred_fallthru
      _
    // Predicated region
    $region6: #{tpu_custom_call.1} parent=1 // pred_check
      _
    $region7: #{tpu_custom_call.1} parent=1 // pred_check_branch
      %11 = sbr.rel (0) target = $region9
    $region8: #{tpu_custom_call.1} parent=1 // pred_region
      _
    $region9: #{tpu_custom_call.1} parent=1 // pred_fallthru
      _
    %v12 = vld [vmem:[%s0] sm:$0xff]
    %v13 = vld [vmem:[%s1] sm:$0xff]
    %vm14 = vcmask 261120
    %v15 = vsel %vm14, %v12, -inf
    %16 = vmax.xlane.f32.xlu0 %v15
    %v17 = vpop.xlane.xlu0 %16
    %v18 = vsub.f32 %v12, %v17
    %v19 = vmul.f32 %v18, 1.442695
    %v20 = vpow.pop %v19
    %v21 = vsel %vm14, %v20, 0.0
    %22 = vadd.xlane.f32.xlu0 %v21
    %v23 = vpop.xlane.xlu0 %22
    %v24 = vlog2.pop %v23
    %v25 = vmul.f32 %v24, 0.6931472
    %v26 = vsel %vm14, %v18, 0.0
    %27 = vadd.xlane.f32.xlu0 %v26
    %v28 = vpop.xlane.xlu0 %27
    %v29 = vlaneseq
    %v30 = vand.u32 %v29, 127
    %31 = vset.pattern.permute.xlu0 0
    %32 = vperm.xlu0 %31, %v13
    %v33 = vpop.permute.xlu0 %32
    %vm34 = vcmp.eq.s32.totalorder %v30, %v33
    %v35 = vsel %vm34, %v18, 0.0
    %v36 = vsel %vm14, %v35, 0.0
    %37 = vadd.xlane.f32.xlu0 %v36
    %v38 = vpop.xlane.xlu0 %37
    %v39 = vmul.f32 %v25, 32.0
    %v40 = vsub.f32 %v39, %v28
    %v41 = vsub.f32 %v25, %v38
    %v42 = vmul.f32 %v40, 0.003125
    %v43 = vmul.f32 %v41, 0.9
    %v44 = vadd.f32 %v42, %v43
    %v45 = vlaneseq
    %v46 = vshrl.u32 %v45, 7
    %s47 = smul.u32 0, 8
    %v48 = vstv %s47
    %v49 = vadd.s32 %v46, %v48
    %vm50 = vcmp.lt.s32.totalorder %v49, 8
    %v51 = vsel %vm50, %v44, 0.0
    %vm52 = vcmask 7168
    %v53 = vsel %vm52, %v51, 0.0
    %54 = vadd.xlane.f32.xlu0 %v53
    %v55 = vpop.xlane.xlu0 %54
    %v56 = vrot.slane %v55, 4
    %v57 = vadd.f32 %v55, %v56
    %v58 = vrot.slane %v57, 2
    %v59 = vadd.f32 %v57, %v58
    %v60 = vrot.slane %v59, 1
    %v61 = vadd.f32 %v59, %v60
    %s62 = vtos %v61
    %v63 = vstv %s62
    %64 = vst [vmem:[#allocation2] sm:$0xff] %v63
    // Predicated region
    $region10: #{tpu_custom_call.1} parent=1 // pred_check
      _
    $region11: #{tpu_custom_call.1} parent=1 // pred_check_branch
      %66 = sbr.rel (0) target = $region13
    $region12: #{tpu_custom_call.1} parent=1 // pred_region
      %s68 = ssub.s32 128, 128
      %69 = vsyncadd [#allocation3], %s68
      %s71 = sshll.u32 [#allocation2], 4
      %s72 = int_to_ptr.vmem [resolvable:$true] %s71
      %74 = dma.vmem_to_hbm [thread:$0]  %s72, 128, %s2, [#allocation3]
    $region13: #{tpu_custom_call.1} parent=1 // pred_fallthru
      _
    // Predicated region
    $region14: #{tpu_custom_call.1} parent=1 // pred_check
      _
    $region15: #{tpu_custom_call.1} parent=1 // pred_check_branch
      %76 = sbr.rel (0) target = $region17
    $region16: #{tpu_custom_call.1} parent=1 // pred_region
      %77 = dma.done [#allocation3], 128
    $region17: #{tpu_custom_call.1} parent=1 // pred_fallthru
      _
    %78 = vsyncpa [#allocation3], 1

</llo_original>
